<compile_context>
chip_gen: v5e
topology: v5e:2x2
jax: 0.10.0
libtpu: 0.0.40
codegen_flags: <defaults>
</compile_context>

<pallas_src>
import jax
import jax.numpy as jnp
from jax.experimental import pallas as pl
from jax.experimental.pallas import tpu as pltpu


def _round_up(a, b):
    return (a + b - 1) // b * b


def policy_net_kernel(x_ref, w1_ref, b1_ref, w2_ref, b2_ref, out_ref):
    # x_ref: (TB, state_dim) f32         w1_ref: (state_dim, 16) bf16   b1_ref: (1, 16) f32
    # w2_ref: (16, action_dim) bf16      b2_ref: (1, action_dim) f32    out_ref: (TB, action_dim) f32

    # fc1 on the MXU: x cast to bf16 in VMEM (VPU pack op, hidden under slack), f32 accumulation.
    xb = x_ref[...].astype(jnp.bfloat16)
    h = jnp.dot(xb, w1_ref[...], preferred_element_type=jnp.float32)
    h = jnp.maximum(h + b1_ref[...], 0.0)                       # f32 VPU

    # fc2: bf16 MXU operands, f32 accumulate + bias.
    logits = jnp.dot(h.astype(jnp.bfloat16), w2_ref[...],
                     preferred_element_type=jnp.float32) + b2_ref[...]

    # Numerically stable softmax along the last dim (all f32, exact division so rows sum to 1).
    m = jnp.max(logits, axis=-1, keepdims=True)
    e = jnp.exp(logits - m)                                     # EUP
    denom = jnp.sum(e, axis=-1, keepdims=True)
    out_ref[...] = (e / denom).astype(out_ref.dtype)


def policy_network_forward(x, w1, b1, w2, b2, *, block_rows=2048):
    """x: [B, state_dim]; w1: [state_dim, 16]; b1: [1, 16] or [16];
    w2: [16, action_dim]; b2: [1, action_dim] or [action_dim].
    Returns softmax probs [B, action_dim] f32."""
    B, state_dim = x.shape
    hidden = w1.shape[1]
    action_dim = w2.shape[1]

    # Weights bf16 (tiny, VMEM-resident); biases f32; x stays f32 and is cast in-kernel.
    xf = x.astype(jnp.float32)
    w1b = w1.astype(jnp.bfloat16)
    w2b = w2.astype(jnp.bfloat16)
    b1f = b1.astype(jnp.float32).reshape(1, hidden)
    b2f = b2.astype(jnp.float32).reshape(1, action_dim)

    # Batch tile: sublane-aligned (multiple of 8), capped at block_rows, and capped so the
    # grid keeps >=2 steps when B is large enough (v7x megacore sharding; neutral on v5e/v6e).
    tb = _round_up(B, 8)
    if B > 8:
        tb = min(tb, _round_up(-(-B // 2), 8))
    tb = min(tb, block_rows)
    grid = pl.cdiv(B, tb)

    cost = pl.CostEstimate(
        flops=2 * B * (state_dim * hidden + hidden * action_dim),
        transcendentals=B * action_dim,
        bytes_accessed=(B * 4 * (state_dim + action_dim)
                        + 2 * (state_dim * hidden + hidden * action_dim)
                        + 4 * (hidden + action_dim)),
    )

    out = pl.pallas_call(
        policy_net_kernel,
        out_shape=jax.ShapeDtypeStruct((B, action_dim), jnp.float32),
        grid_spec=pltpu.PrefetchScalarGridSpec(
            num_scalar_prefetch=0,
            grid=(grid,),
            in_specs=[
                pl.BlockSpec((tb, state_dim), lambda i: (i, 0)),      # streamed x tile
                pl.BlockSpec((state_dim, hidden), lambda i: (0, 0)),  # weights stay VMEM-resident
                pl.BlockSpec((1, hidden), lambda i: (0, 0)),
                pl.BlockSpec((hidden, action_dim), lambda i: (0, 0)),
                pl.BlockSpec((1, action_dim), lambda i: (0, 0)),
            ],
            out_specs=pl.BlockSpec((tb, action_dim), lambda i: (i, 0)),
        ),
        compiler_params=pltpu.CompilerParams(
            # Batch tiles are independent -> shard across both TensorCores on v7x.
            dimension_semantics=("parallel",),
            # Per-tile VMEM at tb=2048 is ~2-3 MiB incl. lane-padded out double buffers,
            # well inside the 32 MiB scoped default on v5e/v6e/v7x.
        ),
        cost_estimate=cost,
    )(xf, w1b, b1f, w2b, b2f)

    return out


if __name__ == "__main__":
    key = jax.random.PRNGKey(0)
    k_x, k_w1, k_b1, k_w2, k_b2 = jax.random.split(key, 5)

    batch = 8
    state_dim = 32
    hidden = 16          # fixed by the module (nn.Linear(state_dim, 16))
    action_dim = 8

    # Deterministic synthetic parameters (uniform, PyTorch-Linear-like scale).
    x = jax.random.normal(k_x, (batch, state_dim), dtype=jnp.float32)
    lim1 = 1.0 / (state_dim ** 0.5)
    lim2 = 1.0 / (hidden ** 0.5)
    w1 = jax.random.uniform(k_w1, (state_dim, hidden), jnp.float32, -lim1, lim1)
    b1 = jax.random.uniform(k_b1, (1, hidden), jnp.float32, -lim1, lim1)
    w2 = jax.random.uniform(k_w2, (hidden, action_dim), jnp.float32, -lim2, lim2)
    b2 = jax.random.uniform(k_b2, (1, action_dim), jnp.float32, -lim2, lim2)

    out = policy_network_forward(x, w1, b1, w2, b2)
    out = jax.block_until_ready(out)

    # Reference in plain JAX, mirroring the kernel's bf16 MXU operands (f32 elsewhere).
    f32 = jnp.float32
    xb = x.astype(jnp.bfloat16).astype(f32)
    w1b = w1.astype(jnp.bfloat16).astype(f32)
    w2b = w2.astype(jnp.bfloat16).astype(f32)
    h_ref = jnp.maximum(xb @ w1b + b1, 0.0)
    hb = h_ref.astype(jnp.bfloat16).astype(f32)
    ref = jax.nn.softmax(hb @ w2b + b2, axis=-1)

    assert out.shape == (batch, action_dim)
    assert jnp.allclose(out, ref, atol=2e-3, rtol=0.0)
    # Exact division in the kernel -> rows sum to 1 within f32 rounding.
    assert jnp.allclose(jnp.sum(out, axis=-1), 1.0, atol=1e-5)

    print("KERNEL_OK")
</pallas_src>

<mosaic_0001>
module attributes {stable_mosaic.version = 11 : i64} {
  func.func @policy_net_kernel(%arg0: i32, %arg1: memref<8x32xf32, #tpu.memory_space<vmem>>, %arg2: memref<32x16xbf16, #tpu.memory_space<vmem>>, %arg3: memref<1x16xf32, #tpu.memory_space<vmem>>, %arg4: memref<16x8xbf16, #tpu.memory_space<vmem>>, %arg5: memref<1x8xf32, #tpu.memory_space<vmem>>, %arg6: memref<8x8xf32, #tpu.memory_space<vmem>>) attributes {dimension_semantics = [#tpu.dimension_semantics<parallel>], iteration_bounds = array<i64: 1>, scalar_prefetch = 0 : i64, scratch_operands = 0 : i64, tpu.core_type = #tpu.core_type<tc>, window_params = [{transform_indices = @transform_0, window_bounds = array<i64: 8, 32>}, {pipeline_mode = #tpu.pipeline_mode<synchronous>, transform_indices = @transform_1, window_bounds = array<i64: 32, 16>}, {pipeline_mode = #tpu.pipeline_mode<synchronous>, transform_indices = @transform_2, window_bounds = array<i64: 1, 16>}, {pipeline_mode = #tpu.pipeline_mode<synchronous>, transform_indices = @transform_3, window_bounds = array<i64: 16, 8>}, {pipeline_mode = #tpu.pipeline_mode<synchronous>, transform_indices = @transform_4, window_bounds = array<i64: 1, 8>}, {transform_indices = @transform_5, window_bounds = array<i64: 8, 8>}]} {
    %c0 = arith.constant 0 : index
    %c0_0 = arith.constant 0 : index
    %0 = vector.load %arg1[%c0, %c0_0] : memref<8x32xf32, #tpu.memory_space<vmem>>, vector<8x32xf32>
    %1 = arith.truncf %0 : vector<8x32xf32> to vector<8x32xbf16>
    %c0_1 = arith.constant 0 : index
    %c0_2 = arith.constant 0 : index
    %2 = vector.load %arg2[%c0_1, %c0_2] : memref<32x16xbf16, #tpu.memory_space<vmem>>, vector<32x16xbf16>
    %cst = arith.constant dense<0.000000e+00> : vector<8x16xf32>
    %3 = tpu.matmul %1, %2, %cst {dimension_numbers = #tpu.dot_dimension_numbers<[1], [0], [0], [1], [0, 0, 1, 1], [], []>} : vector<8x32xbf16>, vector<32x16xbf16>, vector<8x16xf32> -> vector<8x16xf32>
    %c0_3 = arith.constant 0 : index
    %c0_4 = arith.constant 0 : index
    %4 = vector.load %arg3[%c0_3, %c0_4] : memref<1x16xf32, #tpu.memory_space<vmem>>, vector<1x16xf32>
    %5 = vector.broadcast %4 : vector<1x16xf32> to vector<8x16xf32>
    %6 = arith.addf %3, %5 : vector<8x16xf32>
    %cst_5 = arith.constant 0.000000e+00 : f32
    %7 = vector.broadcast %cst_5 : f32 to vector<8x16xf32>
    %8 = arith.maximumf %6, %7 : vector<8x16xf32>
    %9 = arith.truncf %8 : vector<8x16xf32> to vector<8x16xbf16>
    %c0_6 = arith.constant 0 : index
    %c0_7 = arith.constant 0 : index
    %10 = vector.load %arg4[%c0_6, %c0_7] : memref<16x8xbf16, #tpu.memory_space<vmem>>, vector<16x8xbf16>
    %cst_8 = arith.constant dense<0.000000e+00> : vector<8x8xf32>
    %11 = tpu.matmul %9, %10, %cst_8 {dimension_numbers = #tpu.dot_dimension_numbers<[1], [0], [0], [1], [0, 0, 1, 1], [], []>} : vector<8x16xbf16>, vector<16x8xbf16>, vector<8x8xf32> -> vector<8x8xf32>
    %c0_9 = arith.constant 0 : index
    %c0_10 = arith.constant 0 : index
    %12 = vector.load %arg5[%c0_9, %c0_10] : memref<1x8xf32, #tpu.memory_space<vmem>>, vector<1x8xf32>
    %13 = vector.broadcast %12 : vector<1x8xf32> to vector<8x8xf32>
    %14 = arith.addf %11, %13 : vector<8x8xf32>
    %cst_11 = arith.constant dense<0xFF800000> : vector<8xf32>
    %15 = vector.multi_reduction <maximumf>, %14, %cst_11 [1] : vector<8x8xf32> to vector<8xf32>
    %16 = vector.shape_cast %15 : vector<8xf32> to vector<8x1xf32>
    %17 = vector.broadcast %16 : vector<8x1xf32> to vector<8x8xf32>
    %18 = arith.subf %14, %17 : vector<8x8xf32>
    %19 = math.exp %18 : vector<8x8xf32>
    %cst_12 = arith.constant dense<0.000000e+00> : vector<8xf32>
    %20 = vector.multi_reduction <add>, %19, %cst_12 [1] : vector<8x8xf32> to vector<8xf32>
    %21 = vector.shape_cast %20 : vector<8xf32> to vector<8x1xf32>
    %22 = vector.broadcast %21 : vector<8x1xf32> to vector<8x8xf32>
    %23 = arith.divf %19, %22 : vector<8x8xf32>
    %c0_13 = arith.constant 0 : index
    %c0_14 = arith.constant 0 : index
    %24 = vector.load %arg6[%c0_13, %c0_14] : memref<8x8xf32, #tpu.memory_space<vmem>>, vector<8x8xf32>
    tpu.vector_store %arg6[%c0_13, %c0_14], %23 {strides = array<i32>} : memref<8x8xf32, #tpu.memory_space<vmem>>, vector<8x8xf32>,
    return
  }
  func.func @transform_0(%arg0: i32) -> (i32, i32) {
    %c0_i32 = arith.constant 0 : i32
    %c0_i32_0 = arith.constant 0 : i32
    return %arg0, %c0_i32 : i32, i32
  }
  func.func @transform_1(%arg0: i32) -> (i32, i32) {
    %c0_i32 = arith.constant 0 : i32
    %c0_i32_0 = arith.constant 0 : i32
    %c0_i32_1 = arith.constant 0 : i32
    return %c0_i32, %c0_i32_0 : i32, i32
  }
  func.func @transform_2(%arg0: i32) -> (i32, i32) {
    %c0_i32 = arith.constant 0 : i32
    %c0_i32_0 = arith.constant 0 : i32
    %c0_i32_1 = arith.constant 0 : i32
    return %c0_i32, %c0_i32_0 : i32, i32
  }
  func.func @transform_3(%arg0: i32) -> (i32, i32) {
    %c0_i32 = arith.constant 0 : i32
    %c0_i32_0 = arith.constant 0 : i32
    %c0_i32_1 = arith.constant 0 : i32
    return %c0_i32, %c0_i32_0 : i32, i32
  }
  func.func @transform_4(%arg0: i32) -> (i32, i32) {
    %c0_i32 = arith.constant 0 : i32
    %c0_i32_0 = arith.constant 0 : i32
    %c0_i32_1 = arith.constant 0 : i32
    return %c0_i32, %c0_i32_0 : i32, i32
  }
  func.func @transform_5(%arg0: i32) -> (i32, i32) {
    %c0_i32 = arith.constant 0 : i32
    %c0_i32_0 = arith.constant 0 : i32
    return %arg0, %c0_i32 : i32, i32
  }
}

</mosaic_0001>

<llo_original>
// kernel: tpu_custom_call.1
$region0: #{tpu_custom_call.1}
  #allocation0 [shape = 'u32[]', space=smem, size = 0x4, offset = 0x4, fixed_abs, tag = 'smem constant byte address 0x4 - core index']
  #allocation1 [shape = 'u32[72,128]{1,0:T(1,128)}', space=vmem, size = 0x9000, scoped, tag = 'internal scratch']
  %s0 = inlined_call_operand.vmem [shape: f32[8,32], index: 0, kind: input, shape index: {}]
  %s1 = inlined_call_operand.vmem [shape: bf16[32,16], index: 1, kind: input, shape index: {}]
  %s2 = inlined_call_operand.vmem [shape: f32[1,16], index: 2, kind: input, shape index: {}]
  %s3 = inlined_call_operand.vmem [shape: bf16[16,8], index: 3, kind: input, shape index: {}]
  %s4 = inlined_call_operand.vmem [shape: f32[1,8], index: 4, kind: input, shape index: {}]
  %s5 = inlined_call_operand.hbm [shape: f32[8,8], index: 5, kind: output, shape index: {}]
  %s6 = sld [smem:[#allocation0]]
  $region30: #{tpu_custom_call.1} parent=0
    _
  %s8 = ssub.s32 1, %s6
  %s9 = scalar_select 0, %s8, %s6
  $region1: #{tpu_custom_call.1} parent=0
    #allocation2 [shape = 'u8[4096]{0}', space=vmem, size = 0x1000, scoped, tag = 'output window, operand 0, single buffered']
    #allocation3 [shape = 's32[1]{0}', space=sflag, size = 0x4, scoped, tag = 'scoped memory for tpu_custom_call.1']
    %10 = vsyncpa [#allocation3], 0
    // Predicated region
    $region2: #{tpu_custom_call.1} parent=1 // pred_check
      _
    $region3: #{tpu_custom_call.1} parent=1 // pred_check_branch
      %12 = sbr.rel (0) target = $region5
    $region4: #{tpu_custom_call.1} parent=1 // pred_region
      _
    $region5: #{tpu_custom_call.1} parent=1 // pred_fallthru
      _
    // Predicated region
    $region6: #{tpu_custom_call.1} parent=1 // pred_check
      _
    $region7: #{tpu_custom_call.1} parent=1 // pred_check_branch
      %14 = sbr.rel (0) target = $region9
    $region8: #{tpu_custom_call.1} parent=1 // pred_region
      _
    $region9: #{tpu_custom_call.1} parent=1 // pred_fallthru
      _
    // Predicated region
    $region10: #{tpu_custom_call.1} parent=1 // pred_check
      _
    $region11: #{tpu_custom_call.1} parent=1 // pred_check_branch
      %16 = sbr.rel (0) target = $region13
    $region12: #{tpu_custom_call.1} parent=1 // pred_region
      _
    $region13: #{tpu_custom_call.1} parent=1 // pred_fallthru
      _
    // Predicated region
    $region14: #{tpu_custom_call.1} parent=1 // pred_check
      _
    $region15: #{tpu_custom_call.1} parent=1 // pred_check_branch
      %18 = sbr.rel (0) target = $region17
    $region16: #{tpu_custom_call.1} parent=1 // pred_region
      _
    $region17: #{tpu_custom_call.1} parent=1 // pred_fallthru
      _
    // Predicated region
    $region18: #{tpu_custom_call.1} parent=1 // pred_check
      _
    $region19: #{tpu_custom_call.1} parent=1 // pred_check_branch
      %20 = sbr.rel (0) target = $region21
    $region20: #{tpu_custom_call.1} parent=1 // pred_region
      _
    $region21: #{tpu_custom_call.1} parent=1 // pred_fallthru
      _
    %v22 = vld [vmem:[%s0] sm:$0xff]
    %v23 = vpack.c.bf16 %v22, %v22
    %v24 = vld [vmem:[%s1] sm:$0xf]
    %v25 = vld [vmem:[%s1 + $0x4] sm:$0xf]
    %v26 = vld [vmem:[%s1 + $0x8] sm:$0xf]
    %v27 = vld [vmem:[%s1 + $0xc] sm:$0xf]
    %v28 = vld [vmem:[%s2] sm:$0x1]
    %v30 = vperm.slane %v28, 0
    %v36 = vunpack.c.l.b16 %v24
    %v37 = vunpack.c.l.b16 %v25
    %v38 = vunpack.c.l.b16 %v26
    %v39 = vunpack.c.l.b16 %v27
    %v40 = vpack.c.b16 %v37, %v36
    %v41 = vpack.c.b16 %v39, %v38
    %vm44 = vcmask 261120
    %v46 = vsel %vm44, %v23, 0
    %48 = vmatpush.bf16.msra.mxu0 0
    %49 = vmatpush.bf16.msra.mxu0 0
    %50 = vmatpush.bf16.msra.mxu0 0
    %51 = vmatpush.bf16.msra.mxu0 0
    %52 = vmatpush.bf16.msra.mxu0 0
    %53 = vmatpush.bf16.msra.mxu0 0
    %54 = vmatpush.bf16.msra.mxu0 %v41
    %55 = vmatpush.bf16.msra.mxu0 %v40
    %56 = vmatmul.bf16.gmra.mxu0 %v46
    %v57 = vpop.f32.mrf.mxu0
    %v58 = vadd.f32 %v30, %v57
    %v59 = vpop.f32.mrf.mxu0
    %60 = vdwg.mxu0
    %v61 = vmax.f32 %v58, 0.0
    %v62 = vpack.c.bf16 %v61, %v61
    %v63 = vld [vmem:[%s3] sm:$0xf]
    %v64 = vld [vmem:[%s3 + $0x4] sm:$0xf]
    %v65 = vld [vmem:[%s4] sm:$0x1]
    %v67 = vperm.slane %v65, 0
    %v71 = vunpack.c.l.b16 %v63
    %v72 = vunpack.c.l.b16 %v64
    %v73 = vpack.c.b16 %v72, %v71
    %vm75 = vcmask 130048
    %v77 = vsel %vm75, %v62, 0
    %79 = vmatpush.bf16.msra.mxu0 0
    %80 = vmatpush.bf16.msra.mxu0 0
    %81 = vmatpush.bf16.msra.mxu0 0
    %82 = vmatpush.bf16.msra.mxu0 0
    %83 = vmatpush.bf16.msra.mxu0 0
    %84 = vmatpush.bf16.msra.mxu0 0
    %85 = vmatpush.bf16.msra.mxu0 0
    %86 = vmatpush.bf16.msra.mxu0 %v73
    %87 = vmatmul.bf16.gmra.mxu0 %v77
    %v88 = vpop.f32.mrf.mxu0
    %v89 = vadd.f32 %v67, %v88
    %v90 = vpop.f32.mrf.mxu0
    %91 = vdwg.mxu0
    %vm92 = vcmask 64512
    %v93 = vsel %vm92, %v89, -inf
    %94 = vmax.xlane.f32.xlu0 %v93
    %v95 = vpop.xlane.xlu0 %94
    %v96 = vsub.f32 %v89, %v95
    %v97 = vmul.f32 %v96, 1.442695
    %v98 = vpow.pop %v97
    %v99 = vsel %vm92, %v98, 0.0
    %100 = vadd.xlane.f32.xlu0 %v99
    %v101 = vpop.xlane.xlu0 %100
    %v102 = vrcp.pop %v101
    %v103 = vmul.f32 %v101, %v102
    %v104 = vsub.f32 1.0, %v103
    %v105 = vmul.f32 %v102, %v104
    %v106 = vadd.f32 %v102, %v105
    %vm107 = vweird.f32 %v101
    %vm108 = vweird.f32 %v102
    %vm109 = vmor %vm107, %vm108
    %v110 = vsel %vm109, %v102, %v106
    %v111 = vand.u32 2147483647, %v101
    %vm112 = vcmp.eq.f32.partialorder %v111, 8.507059e+37
    %v113 = vand.u32 %v101, 2147483648
    %v114 = vor.u32 1.1754944e-38, %v113
    %v115 = vsel %vm112, %v114, %v110
    %v116 = vmul.f32 %v98, %v115
    %117 = vst.msk [vmem:[#allocation2] sm:$0xff] %vm92, %v116
    // Predicated region
    $region22: #{tpu_custom_call.1} parent=1 // pred_check
      _
    $region23: #{tpu_custom_call.1} parent=1 // pred_check_branch
      %119 = sbr.rel (0) target = $region25
    $region24: #{tpu_custom_call.1} parent=1 // pred_region
      %121 = vsyncadd [#allocation3], 0
      %s123 = sshll.u32 [#allocation2], 4
      %s124 = int_to_ptr.vmem [resolvable:$true] %s123
      %s125 = sshll.u32 %s5, 4
      %s126 = int_to_ptr.hbm [resolvable:$true] %s125
      %128 = dma.vmem_to_hbm [thread:$0]  %s124, 128, %s126, [#allocation3]
    $region25: #{tpu_custom_call.1} parent=1 // pred_fallthru
      _
    // Predicated region
    $region26: #{tpu_custom_call.1} parent=1 // pred_check
      _
    $region27: #{tpu_custom_call.1} parent=1 // pred_check_branch
      %130 = sbr.rel (0) target = $region29
    $region28: #{tpu_custom_call.1} parent=1 // pred_region
      %132 = dma.done [#allocation3], 128
    $region29: #{tpu_custom_call.1} parent=1 // pred_fallthru
      _
    %133 = vsyncpa [#allocation3], 1

</llo_original>
